<compile_context>
chip_gen: v7x
topology: tpu7x:2x2x1
jax: 0.10.0
libtpu: 0.0.40
codegen_flags: <defaults>
</compile_context>

<pallas_src>
import math

import jax
import jax.numpy as jnp
import numpy as np
from jax import lax
from jax.experimental import pallas as pl
from jax.experimental.pallas import tpu as pltpu

PI = math.pi
GAMMA = 0.5772156649015328606065120900824024310421
MTSUN_SI = 4.925491025543575903411922162094833998e-06          # G*Msun/c^3 [s]
MPC_SEC = 3.085677581491367278913937957796471611e22 / 299792458.0  # Mpc in sec

NUM_COEFS = 14
# coefficient slots (per batch element), pfaN already folded into the phase
# coefficients, pi/4 folded into psi_off, amplitude folded into amp_const:
#  0: M_s          1: c0 (=pfaN)   2: c2        3: c3        4: c4
#  5: c5           6: c5logv       7: c6        8: c6logv    9: c7
# 10: psi_off (= 2*phic + Psi_ref + pi/4)
# 11: amp_const (= amp0 * sqrt(-dETaN / FTaN))
# 12: cfac        13: pfac

LANES = 128
MAX_ROWS = 32   # up to 32*128 = 4096 frequencies per grid step


def _cbrt_pos(x):
    # x > 0 cube root (matches torch's x ** (1/3) for positive x)
    return jnp.exp(jnp.log(x) * (1.0 / 3.0))


def _phase_coefficients(mass1, mass2, chi1, chi2):
    """3.5PN TaylorF2 phasing coefficients (per-batch scalars)."""
    M = mass1 + mass2
    eta = mass1 * mass2 / M / M
    m1byM = mass1 / M
    m2byM = mass2 / M
    chi1sq = chi1 * chi1
    chi2sq = chi2 * chi2

    pfaN = 3.0 / (128.0 * eta)
    pfa_v2 = 5.0 * (74.3 / 8.4 + 11.0 * eta) / 9.0
    pfa_v3 = -16.0 * PI
    pfa_v3 = pfa_v3 + m1byM * (25.0 + 38.0 / 3.0 * m1byM) * chi1 \
                    + m2byM * (25.0 + 38.0 / 3.0 * m2byM) * chi2

    pfa_v4 = 5.0 * (3058.673 / 7.056 + 5429.0 / 7.0 * eta + 617.0 * eta * eta) / 72.0
    pfa_v4 = pfa_v4 + (
        247.0 / 4.8 * eta * chi1 * chi2
        + (-721.0 / 4.8) * eta * chi1 * chi2
        + (-720.0 / 9.6 * m1byM * m1byM + 1.0 / 9.6 * m1byM * m1byM) * chi1sq
        + (-720.0 / 9.6 * m2byM * m2byM + 1.0 / 9.6 * m2byM * m2byM) * chi2sq
        + (240.0 / 9.6 * m1byM * m1byM + -7.0 / 9.6 * m1byM * m1byM) * chi1sq
        + (240.0 / 9.6 * m2byM * m2byM + -7.0 / 9.6 * m2byM * m2byM) * chi2sq
    )

    def _so5(m):
        return (1391.5 / 8.4 - 10.0 / 3.0 * m * (1.0 - m)
                + m * (1276.0 / 8.1 + 170.0 / 9.0 * m * (1.0 - m)))

    pfa_v5logv = 5.0 / 3.0 * (772.9 / 8.4 - 13.0 * eta) * PI
    pfa_v5 = 5.0 / 9.0 * (772.9 / 8.4 - 13.0 * eta) * PI
    pfa_v5logv = pfa_v5logv + 3.0 * (-m1byM * _so5(m1byM) * chi1
                                     - m2byM * _so5(m2byM) * chi2)
    pfa_v5 = pfa_v5 + (-m1byM * _so5(m1byM) * chi1) + (-m2byM * _so5(m2byM) * chi2)

    pfa_v6logv = jnp.full_like(eta, -684.8 / 2.1)
    pfa_v6 = (11583.231236531 / 4.69421568 - 640.0 / 3.0 * PI * PI
              - 684.8 / 2.1 * GAMMA
              + eta * (-15737.765635 / 3.048192 + 225.5 / 1.2 * PI * PI)
              + eta * eta * 76.055 / 1.728
              - eta * eta * eta * 127.825 / 1.296
              + pfa_v6logv * math.log(4.0))
    pfa_v6 = pfa_v6 + (
        PI * m1byM * (1490.0 / 3.0 + m1byM * 260.0) * chi1
        + PI * m2byM * (1490.0 / 3.0 + m2byM * 260.0) * chi2
        + (326.75 / 1.12 + 557.5 / 1.8 * eta) * eta * chi1 * chi2
        + ((4703.5 / 8.4 + 2935.0 / 6.0 * m1byM - 120.0 * m1byM * m1byM) * m1byM * m1byM
           + (-4108.25 / 6.72 - 108.5 / 1.2 * m1byM + 125.5 / 3.6 * m1byM * m1byM)
           * m1byM * m1byM) * chi1sq
        + ((4703.5 / 8.4 + 2935.0 / 6.0 * m2byM - 120.0 * m2byM * m2byM) * m2byM * m2byM
           + (-4108.25 / 6.72 - 108.5 / 1.2 * m2byM + 125.5 / 3.6 * m2byM * m2byM)
           * m2byM * m2byM) * chi2sq
    )

    pfa_v7 = PI * (770.96675 / 2.54016 + 378.515 / 1.512 * eta
                   - 740.45 / 7.56 * eta * eta)

    def _so7(m):
        return m * (-17097.8035 / 4.8384 + eta * 28764.25 / 6.72
                    + eta * eta * 47.35 / 1.44
                    + m * (-7189.233785 / 1.524096 + eta * 458.555 / 3.024
                           - eta * eta * 534.5 / 7.2))

    pfa_v7 = pfa_v7 + _so7(m1byM) * chi1 + _so7(m2byM) * chi2

    return (pfaN, pfa_v2, pfa_v3, pfa_v4, pfa_v5, pfa_v5logv,
            pfa_v6, pfa_v6logv, pfa_v7)


def _phase_from_v(v, pfaN, pfa_v2, pfa_v3, pfa_v4, pfa_v5, pfa_v5logv,
                  pfa_v6, pfa_v6logv, pfa_v7):
    """Original (unfolded) TaylorF2 phasing vs v = (pi M f)^(1/3). Host side."""
    logv = jnp.log(v)
    v2 = v * v
    v3 = v2 * v
    v4 = v3 * v
    v5 = v4 * v
    v6 = v5 * v
    v7 = v6 * v
    phasing = pfa_v7 * v7
    phasing = phasing + pfa_v6 * v6 + pfa_v6logv * (v6 * logv)
    phasing = phasing + pfa_v5 * v5 + pfa_v5logv * (v5 * logv)
    phasing = phasing + pfa_v4 * v4
    phasing = phasing + pfa_v3 * v3
    phasing = phasing + pfa_v2 * v2
    phasing = phasing + 1.0          # pfa_v0 (pfa_v1 == 0)
    phasing = phasing / v5
    return phasing * pfaN


# ----------------------------------------------------------------------------
# Pallas kernel
# ----------------------------------------------------------------------------

def taylorf2_kernel(coef_ref, f_ref, out_ref):
    # Per-batch scalars (coef_ref block is (1, 1, NUM_COEFS) for this batch).
    M_s       = coef_ref[0, 0, 0]
    c0        = coef_ref[0, 0, 1]
    c2        = coef_ref[0, 0, 2]
    c3        = coef_ref[0, 0, 3]
    c4        = coef_ref[0, 0, 4]
    c5        = coef_ref[0, 0, 5]
    c5l       = coef_ref[0, 0, 6]
    c6        = coef_ref[0, 0, 7]
    c6l       = coef_ref[0, 0, 8]
    c7        = coef_ref[0, 0, 9]
    psi_off   = coef_ref[0, 0, 10]
    amp_const = coef_ref[0, 0, 11]
    cfac      = coef_ref[0, 0, 12]
    pfac      = coef_ref[0, 0, 13]

    f_blk = f_ref[...]                                   # (S, 128)

    # v = (pi*M_s*f)^(1/3) with a single log/exp; logv reused for the phase.
    logv = jnp.log((PI * M_s) * f_blk) * (1.0 / 3.0)
    v = jnp.exp(logv)
    v2 = v * v
    v3 = v2 * v
    v4 = v2 * v2
    v5 = v4 * v
    v6 = v3 * v3
    v7 = v6 * v

    # 3.5PN phasing; pfaN is pre-folded into c0..c7 on the host.
    phasing = c7 * v7
    phasing = phasing + (c6 + c6l * logv) * v6
    phasing = phasing + (c5 + c5l * logv) * v5
    phasing = phasing + c4 * v4
    phasing = phasing + c3 * v3
    phasing = phasing + c2 * v2
    phasing = phasing + c0
    Psi = phasing / v5

    theta = Psi - psi_off           # psi_off = 2*phic + Psi_ref + pi/4
    # Newtonian SPA amplitude: amp0*sqrt(-dE/flux)*v == amp_const / sqrt(v^7)
    amp = amp_const * lax.rsqrt(v7)

    cos_t = jnp.cos(theta)
    sin_t = jnp.sin(theta)
    h_re = amp * cos_t              # Re{amp * exp(-i theta)}
    h_im = -(amp * sin_t)           # Im{amp * exp(-i theta)}

    out_ref[0, 0, :, :] = cfac * h_im        # hc = -1j * cfac * htilde
    out_ref[1, 0, :, :] = -(cfac * h_re)
    out_ref[2, 0, :, :] = pfac * h_re        # hp = pfac * htilde
    out_ref[3, 0, :, :] = pfac * h_im


def _choose_tile(n):
    """Return (padded_N, S) with padded_N % (S*128) == 0 and S <= MAX_ROWS."""
    np_ = ((n + LANES - 1) // LANES) * LANES
    r = np_ // LANES
    if r <= MAX_ROWS:
        return np_, r
    if r % 8 != 0:
        r = ((r + 7) // 8) * 8
        np_ = r * LANES
    for s in (32, 24, 16, 8):
        if r % s == 0:
            return np_, s
    return np_, 8


def taylorf2_pallas(f, coefs):
    """f: (N,) float32 positive freqs; coefs: (B, NUM_COEFS) float32."""
    N = int(f.shape[0])
    B = int(coefs.shape[0])
    Np, S = _choose_tile(N)
    if Np != N:
        # Pad with the last frequency (positive) so log/rsqrt stay finite.
        f = jnp.concatenate([f, jnp.full((Np - N,), f[-1], dtype=f.dtype)])
    R = Np // LANES
    f2 = f.reshape(R, LANES)
    coefs3 = coefs.reshape(B, 1, NUM_COEFS)

    grid = (B, R // S)
    out_shape = jax.ShapeDtypeStruct((4, B, R, LANES), jnp.float32)

    elems = B * Np
    cost = pl.CostEstimate(
        flops=50 * elems,
        transcendentals=6 * elems,
        bytes_accessed=16 * elems + 4 * Np + 4 * B * NUM_COEFS,
    )

    out = pl.pallas_call(
        taylorf2_kernel,
        out_shape=out_shape,
        grid=grid,
        in_specs=[
            # per-batch coefficient row (tiny, re-used across the freq axis)
            pl.BlockSpec((1, 1, NUM_COEFS), lambda b, j: (b, 0, 0)),
            # dense (S, 128) frequency tile
            pl.BlockSpec((S, LANES), lambda b, j: (j, 0)),
        ],
        # single fused output: 4 planes x batch b x (S, 128) freq tile
        out_specs=pl.BlockSpec((4, 1, S, LANES), lambda b, j: (0, b, j, 0)),
        compiler_params=pltpu.CompilerParams(
            dimension_semantics=("parallel", "parallel")),
        cost_estimate=cost,
    )(coefs3, f2)

    out = out.reshape(4, B, Np)[:, :, :N]
    return out[0], out[1], out[2], out[3]


# ----------------------------------------------------------------------------
# Forward wrapper (matches the torch module's semantics)
# ----------------------------------------------------------------------------

def taylorf2_forward(f, chirp_mass, mass_ratio, chi1, chi2, distance, phic,
                     inclination, f_ref):
    """Returns (hc, hp) complex64 of shape (B, N)."""
    # chirp_mass_and_mass_ratio_to_components
    total_mass = chirp_mass * (1.0 + mass_ratio) ** 1.2 / mass_ratio ** 0.6
    mass1 = total_mass / (1.0 + mass_ratio)
    mass2 = mass1 * mass_ratio

    cfac = jnp.cos(inclination)
    pfac = 0.5 * (1.0 + cfac * cfac)

    mass1_s = mass1 * MTSUN_SI
    mass2_s = mass2 * MTSUN_SI
    M_s = mass1_s + mass2_s
    eta = mass1_s * mass2_s / M_s / M_s

    pc = _phase_coefficients(mass1, mass2, chi1, chi2)
    (pfaN, pfa_v2, pfa_v3, pfa_v4, pfa_v5, pfa_v5logv,
     pfa_v6, pfa_v6logv, pfa_v7) = pc

    # reference phase at f_ref (constant across frequency -> per-batch scalar)
    v_ref = _cbrt_pos(PI * M_s * f_ref)
    Psi_ref = _phase_from_v(v_ref, *pc)
    psi_off = 2.0 * phic + Psi_ref + PI / 4.0          # fold -pi/4 into offset

    amp0 = -4.0 * mass1_s * mass2_s * (PI / 12.0) ** 0.5
    amp0 = amp0 / (distance * MPC_SEC)
    FTaN = 32.0 * eta * eta / 5.0
    dETaN = 2.0 * (-eta / 2.0)
    amp_const = amp0 * jnp.sqrt(-dETaN / FTaN)         # amp = amp_const/sqrt(v^7)

    coefs = jnp.stack(
        [
            M_s,
            pfaN,                                        # c0 (the "+1" term)
            pfaN * pfa_v2, pfaN * pfa_v3, pfaN * pfa_v4,
            pfaN * pfa_v5, pfaN * pfa_v5logv,
            pfaN * pfa_v6, pfaN * pfa_v6logv,
            pfaN * pfa_v7,
            psi_off, amp_const, cfac, pfac,
        ],
        axis=1,
    ).astype(jnp.float32)

    hc_re, hc_im, hp_re, hp_im = taylorf2_pallas(f.astype(jnp.float32), coefs)
    hc = hc_re + 1j * hc_im
    hp = hp_re + 1j * hp_im
    return hc, hp


# ----------------------------------------------------------------------------
# Plain-JAX reference using the ORIGINAL (unfolded) formulation, for checking
# the algebraic refactoring done inside the kernel.
# ----------------------------------------------------------------------------

def _reference_forward(f, chirp_mass, mass_ratio, chi1, chi2, distance, phic,
                       inclination, f_ref):
    total_mass = chirp_mass * (1.0 + mass_ratio) ** 1.2 / mass_ratio ** 0.6
    mass1 = total_mass / (1.0 + mass_ratio)
    mass2 = mass1 * mass_ratio

    cfac = jnp.cos(inclination)
    pfac = 0.5 * (1.0 + cfac * cfac)

    mass1_s = mass1 * MTSUN_SI
    mass2_s = mass2 * MTSUN_SI
    M_s = mass1_s + mass2_s
    eta = mass1_s * mass2_s / M_s / M_s

    pc = _phase_coefficients(mass1, mass2, chi1, chi2)
    pcb = tuple(p[:, None] for p in pc)

    Mf = M_s[:, None] * f[None, :]
    v = (PI * Mf) ** (1.0 / 3.0)
    Psi = _phase_from_v(v, *pcb)
    v_ref = (PI * M_s * f_ref) ** (1.0 / 3.0)
    Psi_ref = _phase_from_v(v_ref, *pc)
    Psi = Psi - 2.0 * phic[:, None] - Psi_ref[:, None]

    v10 = v ** 10
    FTaN = 32.0 * eta * eta / 5.0
    dETaN = 2.0 * (-eta / 2.0)
    amp0 = -4.0 * mass1_s * mass2_s * (PI / 12.0) ** 0.5 / (distance * MPC_SEC)
    flux = FTaN[:, None] * v10
    dEnergy = dETaN[:, None] * v
    amp = jnp.sqrt(-dEnergy / flux) * v * amp0[:, None]

    h = amp * jnp.exp(-1j * (Psi - PI / 4.0))
    hp = h * pfac[:, None]
    hc = -1j * h * cfac[:, None]
    return hc, hp


if __name__ == "__main__":
    B = 4
    N = 256
    f_ref_hz = 20.0

    key = jax.random.PRNGKey(0)
    ks = jax.random.split(key, 7)
    chirp_mass  = jax.random.uniform(ks[0], (B,), minval=15.0, maxval=30.0)
    mass_ratio  = jax.random.uniform(ks[1], (B,), minval=0.5, maxval=0.99)
    chi1        = jax.random.uniform(ks[2], (B,), minval=-0.5, maxval=0.5)
    chi2        = jax.random.uniform(ks[3], (B,), minval=-0.5, maxval=0.5)
    distance    = jax.random.uniform(ks[4], (B,), minval=100.0, maxval=1000.0)
    phic        = jax.random.uniform(ks[5], (B,), minval=0.0, maxval=2.0 * PI)
    inclination = jax.random.uniform(ks[6], (B,), minval=0.0, maxval=PI)

    # strictly positive frequency grid (20 .. 275 Hz, 1 Hz spacing);
    # TODO(synk): like the torch module, f must be > 0 (DC bin would be inf/NaN).
    f = 20.0 + jnp.arange(N, dtype=jnp.float32)

    hc, hp = taylorf2_forward(
        f, chirp_mass, mass_ratio, chi1, chi2, distance, phic, inclination,
        f_ref_hz,
    )
    jax.block_until_ready((hc, hp))

    hc_ref, hp_ref = _reference_forward(
        f, chirp_mass, mass_ratio, chi1, chi2, distance, phic, inclination,
        f_ref_hz,
    )
    hc_ref = np.asarray(hc_ref)
    hp_ref = np.asarray(hp_ref)

    scale = float(np.max(np.abs(hp_ref)))
    np.testing.assert_allclose(np.asarray(hc), hc_ref, atol=1e-2 * scale, rtol=0)
    np.testing.assert_allclose(np.asarray(hp), hp_ref, atol=1e-2 * scale, rtol=0)
    assert hc.shape == (B, N) and hp.shape == (B, N)
    assert hc.dtype == jnp.complex64 and hp.dtype == jnp.complex64

    print("KERNEL_OK")
</pallas_src>

<mosaic_0001>
module attributes {stable_mosaic.version = 11 : i64} {
  func.func @taylorf2_kernel(%arg0: i32, %arg1: i32, %arg2: memref<1x1x14xf32, #tpu.memory_space<vmem>>, %arg3: memref<2x128xf32, #tpu.memory_space<vmem>>, %arg4: memref<4x1x2x128xf32, #tpu.memory_space<vmem>>) attributes {dimension_semantics = [#tpu.dimension_semantics<parallel>, #tpu.dimension_semantics<parallel>], iteration_bounds = array<i64: 4, 1>, scalar_prefetch = 0 : i64, scratch_operands = 0 : i64, tpu.core_type = #tpu.core_type<tc>, window_params = [{transform_indices = @transform_0, window_bounds = array<i64: 1, 1, 14>}, {transform_indices = @transform_1, window_bounds = array<i64: 2, 128>}, {transform_indices = @transform_2, window_bounds = array<i64: 4, 1, 2, 128>}]} {
    %c0 = arith.constant 0 : index
    %c0_0 = arith.constant 0 : index
    %c0_1 = arith.constant 0 : index
    %0 = vector.load %arg2[%c0, %c0_0, %c0_1] : memref<1x1x14xf32, #tpu.memory_space<vmem>>, vector<1x1x1xf32>
    %1 = vector.extract %0[0, 0, 0] : f32 from vector<1x1x1xf32>
    %c0_2 = arith.constant 0 : index
    %c0_3 = arith.constant 0 : index
    %c1 = arith.constant 1 : index
    %2 = vector.load %arg2[%c0_2, %c0_3, %c1] : memref<1x1x14xf32, #tpu.memory_space<vmem>>, vector<1x1x1xf32>
    %3 = vector.extract %2[0, 0, 0] : f32 from vector<1x1x1xf32>
    %c0_4 = arith.constant 0 : index
    %c0_5 = arith.constant 0 : index
    %c2 = arith.constant 2 : index
    %4 = vector.load %arg2[%c0_4, %c0_5, %c2] : memref<1x1x14xf32, #tpu.memory_space<vmem>>, vector<1x1x1xf32>
    %5 = vector.extract %4[0, 0, 0] : f32 from vector<1x1x1xf32>
    %c0_6 = arith.constant 0 : index
    %c0_7 = arith.constant 0 : index
    %c3 = arith.constant 3 : index
    %6 = vector.load %arg2[%c0_6, %c0_7, %c3] : memref<1x1x14xf32, #tpu.memory_space<vmem>>, vector<1x1x1xf32>
    %7 = vector.extract %6[0, 0, 0] : f32 from vector<1x1x1xf32>
    %c0_8 = arith.constant 0 : index
    %c0_9 = arith.constant 0 : index
    %c4 = arith.constant 4 : index
    %8 = vector.load %arg2[%c0_8, %c0_9, %c4] : memref<1x1x14xf32, #tpu.memory_space<vmem>>, vector<1x1x1xf32>
    %9 = vector.extract %8[0, 0, 0] : f32 from vector<1x1x1xf32>
    %c0_10 = arith.constant 0 : index
    %c0_11 = arith.constant 0 : index
    %c5 = arith.constant 5 : index
    %10 = vector.load %arg2[%c0_10, %c0_11, %c5] : memref<1x1x14xf32, #tpu.memory_space<vmem>>, vector<1x1x1xf32>
    %11 = vector.extract %10[0, 0, 0] : f32 from vector<1x1x1xf32>
    %c0_12 = arith.constant 0 : index
    %c0_13 = arith.constant 0 : index
    %c6 = arith.constant 6 : index
    %12 = vector.load %arg2[%c0_12, %c0_13, %c6] : memref<1x1x14xf32, #tpu.memory_space<vmem>>, vector<1x1x1xf32>
    %13 = vector.extract %12[0, 0, 0] : f32 from vector<1x1x1xf32>
    %c0_14 = arith.constant 0 : index
    %c0_15 = arith.constant 0 : index
    %c7 = arith.constant 7 : index
    %14 = vector.load %arg2[%c0_14, %c0_15, %c7] : memref<1x1x14xf32, #tpu.memory_space<vmem>>, vector<1x1x1xf32>
    %15 = vector.extract %14[0, 0, 0] : f32 from vector<1x1x1xf32>
    %c0_16 = arith.constant 0 : index
    %c0_17 = arith.constant 0 : index
    %c8 = arith.constant 8 : index
    %16 = vector.load %arg2[%c0_16, %c0_17, %c8] : memref<1x1x14xf32, #tpu.memory_space<vmem>>, vector<1x1x1xf32>
    %17 = vector.extract %16[0, 0, 0] : f32 from vector<1x1x1xf32>
    %c0_18 = arith.constant 0 : index
    %c0_19 = arith.constant 0 : index
    %c9 = arith.constant 9 : index
    %18 = vector.load %arg2[%c0_18, %c0_19, %c9] : memref<1x1x14xf32, #tpu.memory_space<vmem>>, vector<1x1x1xf32>
    %19 = vector.extract %18[0, 0, 0] : f32 from vector<1x1x1xf32>
    %c0_20 = arith.constant 0 : index
    %c0_21 = arith.constant 0 : index
    %c10 = arith.constant 10 : index
    %20 = vector.load %arg2[%c0_20, %c0_21, %c10] : memref<1x1x14xf32, #tpu.memory_space<vmem>>, vector<1x1x1xf32>
    %21 = vector.extract %20[0, 0, 0] : f32 from vector<1x1x1xf32>
    %c0_22 = arith.constant 0 : index
    %c0_23 = arith.constant 0 : index
    %c11 = arith.constant 11 : index
    %22 = vector.load %arg2[%c0_22, %c0_23, %c11] : memref<1x1x14xf32, #tpu.memory_space<vmem>>, vector<1x1x1xf32>
    %23 = vector.extract %22[0, 0, 0] : f32 from vector<1x1x1xf32>
    %c0_24 = arith.constant 0 : index
    %c0_25 = arith.constant 0 : index
    %c12 = arith.constant 12 : index
    %24 = vector.load %arg2[%c0_24, %c0_25, %c12] : memref<1x1x14xf32, #tpu.memory_space<vmem>>, vector<1x1x1xf32>
    %25 = vector.extract %24[0, 0, 0] : f32 from vector<1x1x1xf32>
    %c0_26 = arith.constant 0 : index
    %c0_27 = arith.constant 0 : index
    %c13 = arith.constant 13 : index
    %26 = vector.load %arg2[%c0_26, %c0_27, %c13] : memref<1x1x14xf32, #tpu.memory_space<vmem>>, vector<1x1x1xf32>
    %27 = vector.extract %26[0, 0, 0] : f32 from vector<1x1x1xf32>
    %c0_28 = arith.constant 0 : index
    %c0_29 = arith.constant 0 : index
    %28 = vector.load %arg3[%c0_28, %c0_29] : memref<2x128xf32, #tpu.memory_space<vmem>>, vector<2x128xf32>
    %cst = arith.constant 3.14159274 : f32
    %29 = arith.mulf %cst, %1 : f32
    %30 = vector.broadcast %29 : f32 to vector<2x128xf32>
    %31 = arith.mulf %30, %28 : vector<2x128xf32>
    %32 = math.log %31 : vector<2x128xf32>
    %cst_30 = arith.constant 0.333333343 : f32
    %33 = vector.broadcast %cst_30 : f32 to vector<2x128xf32>
    %34 = arith.mulf %32, %33 : vector<2x128xf32>
    %35 = math.exp %34 : vector<2x128xf32>
    %36 = arith.mulf %35, %35 : vector<2x128xf32>
    %37 = arith.mulf %36, %35 : vector<2x128xf32>
    %38 = arith.mulf %36, %36 : vector<2x128xf32>
    %39 = arith.mulf %38, %35 : vector<2x128xf32>
    %40 = arith.mulf %37, %37 : vector<2x128xf32>
    %41 = arith.mulf %40, %35 : vector<2x128xf32>
    %42 = vector.broadcast %19 : f32 to vector<2x128xf32>
    %43 = arith.mulf %42, %41 : vector<2x128xf32>
    %44 = vector.broadcast %17 : f32 to vector<2x128xf32>
    %45 = arith.mulf %44, %34 : vector<2x128xf32>
    %46 = vector.broadcast %15 : f32 to vector<2x128xf32>
    %47 = arith.addf %46, %45 : vector<2x128xf32>
    %48 = arith.mulf %47, %40 : vector<2x128xf32>
    %49 = arith.addf %43, %48 : vector<2x128xf32>
    %50 = vector.broadcast %13 : f32 to vector<2x128xf32>
    %51 = arith.mulf %50, %34 : vector<2x128xf32>
    %52 = vector.broadcast %11 : f32 to vector<2x128xf32>
    %53 = arith.addf %52, %51 : vector<2x128xf32>
    %54 = arith.mulf %53, %39 : vector<2x128xf32>
    %55 = arith.addf %49, %54 : vector<2x128xf32>
    %56 = vector.broadcast %9 : f32 to vector<2x128xf32>
    %57 = arith.mulf %56, %38 : vector<2x128xf32>
    %58 = arith.addf %55, %57 : vector<2x128xf32>
    %59 = vector.broadcast %7 : f32 to vector<2x128xf32>
    %60 = arith.mulf %59, %37 : vector<2x128xf32>
    %61 = arith.addf %58, %60 : vector<2x128xf32>
    %62 = vector.broadcast %5 : f32 to vector<2x128xf32>
    %63 = arith.mulf %62, %36 : vector<2x128xf32>
    %64 = arith.addf %61, %63 : vector<2x128xf32>
    %65 = vector.broadcast %3 : f32 to vector<2x128xf32>
    %66 = arith.addf %64, %65 : vector<2x128xf32>
    %67 = arith.divf %66, %39 : vector<2x128xf32>
    %68 = vector.broadcast %21 : f32 to vector<2x128xf32>
    %69 = arith.subf %67, %68 : vector<2x128xf32>
    %70 = math.rsqrt %41 : vector<2x128xf32>
    %71 = vector.broadcast %23 : f32 to vector<2x128xf32>
    %72 = arith.mulf %71, %70 : vector<2x128xf32>
    %73 = math.cos %69 : vector<2x128xf32>
    %74 = math.sin %69 : vector<2x128xf32>
    %75 = arith.mulf %72, %73 : vector<2x128xf32>
    %76 = arith.mulf %72, %74 : vector<2x128xf32>
    %cst_31 = arith.constant 0.000000e+00 : f32
    %77 = vector.broadcast %cst_31 : f32 to vector<2x128xf32>
    %78 = arith.subf %77, %76 : vector<2x128xf32>
    %79 = vector.broadcast %25 : f32 to vector<2x128xf32>
    %80 = arith.mulf %79, %78 : vector<2x128xf32>
    %c0_32 = arith.constant 0 : index
    %c0_33 = arith.constant 0 : index
    %c0_34 = arith.constant 0 : index
    %c0_35 = arith.constant 0 : index
    %81 = vector.load %arg4[%c0_32, %c0_33, %c0_34, %c0_35] : memref<4x1x2x128xf32, #tpu.memory_space<vmem>>, vector<1x1x2x128xf32>
    %82 = vector.shape_cast %81 : vector<1x1x2x128xf32> to vector<2x128xf32>
    %83 = vector.shape_cast %80 : vector<2x128xf32> to vector<1x1x2x128xf32>
    tpu.vector_store %arg4[%c0_32, %c0_33, %c0_34, %c0_35], %83 {strides = array<i32>} : memref<4x1x2x128xf32, #tpu.memory_space<vmem>>, vector<1x1x2x128xf32>,
    %84 = vector.broadcast %25 : f32 to vector<2x128xf32>
    %85 = arith.mulf %84, %75 : vector<2x128xf32>
    %cst_36 = arith.constant 0.000000e+00 : f32
    %86 = vector.broadcast %cst_36 : f32 to vector<2x128xf32>
    %87 = arith.subf %86, %85 : vector<2x128xf32>
    %c1_37 = arith.constant 1 : index
    %c0_38 = arith.constant 0 : index
    %c0_39 = arith.constant 0 : index
    %c0_40 = arith.constant 0 : index
    %88 = vector.load %arg4[%c1_37, %c0_38, %c0_39, %c0_40] : memref<4x1x2x128xf32, #tpu.memory_space<vmem>>, vector<1x1x2x128xf32>
    %89 = vector.shape_cast %88 : vector<1x1x2x128xf32> to vector<2x128xf32>
    %90 = vector.shape_cast %87 : vector<2x128xf32> to vector<1x1x2x128xf32>
    tpu.vector_store %arg4[%c1_37, %c0_38, %c0_39, %c0_40], %90 {strides = array<i32>} : memref<4x1x2x128xf32, #tpu.memory_space<vmem>>, vector<1x1x2x128xf32>,
    %91 = vector.broadcast %27 : f32 to vector<2x128xf32>
    %92 = arith.mulf %91, %75 : vector<2x128xf32>
    %c2_41 = arith.constant 2 : index
    %c0_42 = arith.constant 0 : index
    %c0_43 = arith.constant 0 : index
    %c0_44 = arith.constant 0 : index
    %93 = vector.load %arg4[%c2_41, %c0_42, %c0_43, %c0_44] : memref<4x1x2x128xf32, #tpu.memory_space<vmem>>, vector<1x1x2x128xf32>
    %94 = vector.shape_cast %93 : vector<1x1x2x128xf32> to vector<2x128xf32>
    %95 = vector.shape_cast %92 : vector<2x128xf32> to vector<1x1x2x128xf32>
    tpu.vector_store %arg4[%c2_41, %c0_42, %c0_43, %c0_44], %95 {strides = array<i32>} : memref<4x1x2x128xf32, #tpu.memory_space<vmem>>, vector<1x1x2x128xf32>,
    %96 = vector.broadcast %27 : f32 to vector<2x128xf32>
    %97 = arith.mulf %96, %78 : vector<2x128xf32>
    %c3_45 = arith.constant 3 : index
    %c0_46 = arith.constant 0 : index
    %c0_47 = arith.constant 0 : index
    %c0_48 = arith.constant 0 : index
    %98 = vector.load %arg4[%c3_45, %c0_46, %c0_47, %c0_48] : memref<4x1x2x128xf32, #tpu.memory_space<vmem>>, vector<1x1x2x128xf32>
    %99 = vector.shape_cast %98 : vector<1x1x2x128xf32> to vector<2x128xf32>
    %100 = vector.shape_cast %97 : vector<2x128xf32> to vector<1x1x2x128xf32>
    tpu.vector_store %arg4[%c3_45, %c0_46, %c0_47, %c0_48], %100 {strides = array<i32>} : memref<4x1x2x128xf32, #tpu.memory_space<vmem>>, vector<1x1x2x128xf32>,
    return
  }
  func.func @transform_0(%arg0: i32, %arg1: i32) -> (i32, i32, i32) {
    %c0_i32 = arith.constant 0 : i32
    %c0_i32_0 = arith.constant 0 : i32
    %c0_i32_1 = arith.constant 0 : i32
    return %arg0, %c0_i32, %c0_i32_0 : i32, i32, i32
  }
  func.func @transform_1(%arg0: i32, %arg1: i32) -> (i32, i32) {
    %c0_i32 = arith.constant 0 : i32
    %c0_i32_0 = arith.constant 0 : i32
    return %arg1, %c0_i32 : i32, i32
  }
  func.func @transform_2(%arg0: i32, %arg1: i32) -> (i32, i32, i32, i32) {
    %c0_i32 = arith.constant 0 : i32
    %c0_i32_0 = arith.constant 0 : i32
    %c0_i32_1 = arith.constant 0 : i32
    return %c0_i32, %arg0, %arg1, %c0_i32_0 : i32, i32, i32, i32
  }
}

</mosaic_0001>

<llo_original>
// kernel: tpu_custom_call.1
$region0: #{tpu_custom_call.1}
  #allocation0 [shape = 'u32[]', space=smem, size = 0x4, offset = 0x4, fixed_abs, tag = 'smem constant byte address 0x4 - core index']
  #allocation1 [shape = 'u32[144,128]{1,0:T(1,128)}', space=vmem, size = 0x12000, scoped, tag = 'internal scratch']
  %s0 = inlined_call_operand.hbm [shape: f32[4,1,14], index: 0, kind: input, shape index: {}]
  %s1 = inlined_call_operand.vmem [shape: f32[2,128], index: 1, kind: input, shape index: {}]
  %s2 = inlined_call_operand.hbm [shape: f32[4,4,2,128], index: 2, kind: output, shape index: {}]
  %s3 = sld [smem:[#allocation0]]
  $region45: #{tpu_custom_call.1} parent=0
    _
  %s5 = ssub.s32 1, %s3
  %s6 = scalar_select 0, %s5, %s3
  $region1: #{tpu_custom_call.1} parent=0
    #allocation2 [shape = 'u8[1024]{0}', space=vmem, size = 0x400, scoped, tag = 'input window, operand 0']
    #allocation3 [shape = 's32[2]{0}', space=sflag, size = 0x8, scoped, tag = 'scoped memory for tpu_custom_call.1']
    #allocation4 [shape = 's32[2]{0}', space=sflag, size = 0x8, scoped, tag = 'scoped memory for tpu_custom_call.1']
    #allocation5 [shape = 'u8[8192]{0}', space=vmem, size = 0x2000, scoped, tag = 'output window, operand 0']
    %7 = vsyncpa [#allocation3], 0
    %s8 = scalar_lea.sflag [#allocation3], 1
    %9 = vsyncpa %s8, 0
    %10 = vsyncpa [#allocation4], 0
    %s11 = scalar_lea.sflag [#allocation4], 1
    %12 = vsyncpa %s11, 0
    loop: start=0, step=1, limit=6
    $region2: #{tpu_custom_call.1} parent=1 // loop_pre_header
      _
    $region3: #{tpu_custom_call.1} parent=1 // loop_header
      %s14 = sphi 0, %s18
      %p15 = scmp.ge.s32.totalorder %s14, 6
      %s21 = sphi 0, %s33
      %s22 = sphi 0, %s29
      %s23 = sphi 0, %s21
      %s24 = sphi 0, %s22
      %s25 = sphi 0, %s23
      %s26 = sphi 0, %s24
      %s36 = sphi 0, %s38
      %s39 = sphi 0, %s36
      %s40 = sphi 0, %s39
      %s56 = sphi 0, %s40
      %s62 = sphi 0, %s64
      %s65 = sphi 0, %s62
      %s66 = sphi 0, %s65
      %s82 = sphi 0, %s66
      %s90 = sphi 0, %s92
      %s93 = sphi 0, %s90
      %s94 = sphi 0, %s93
      %s110 = sphi 0, %s94
    $region4: #{tpu_custom_call.1} parent=1 // loop_header_branch
      %17 = sbr.rel (%p15) target = $region8
    $region5: #{tpu_custom_call.1} parent=1 // loop_body
      %s19 = ssub.s32 %s14, 1
      %s20 = ssub.s32 %s14, 2
      %s27 = sadd.s32 1, %s22
      %p28 = scmp.ge.s32.totalorder %s27, 1
      %s29 = scalar_select %p28, 0, %s27
      %s30 = sadd.s32 1, %s21
      %s31 = scalar_select %p28, %s30, %s21
      %p32 = scmp.ge.s32.totalorder %s31, 4
      %s33 = scalar_select %p32, 0, %s31
      %s34 = ssub.s32 %s21, %s33
      %p35 = scmp.eq.s32.totalorder %s34, 0
      %s37 = sadd.s32 %s36, 1
      %s38 = scalar_select %p35, %s36, %s37
      %p41 = pneg %p35
      %p42 = scmp.eq.s32.totalorder %s14, 3
      %p43 = por %p41, %p42
      %p44 = scmp.ne.s32.totalorder %s36, %s39
      %p45 = scmp.eq.s32.totalorder %s14, 0
      %p46 = por %p44, %p45
      %p47 = scmp.ne.s32.totalorder %s36, %s39
      %p48 = scmp.eq.s32.totalorder %s19, 3
      %p49 = por %p47, %p48
      %p50 = scmp.ne.s32.totalorder %s39, %s40
      %p51 = scmp.eq.s32.totalorder %s19, 0
      %p52 = por %p50, %p51
      %p53 = scmp.ne.s32.totalorder %s39, %s40
      %p54 = scmp.eq.s32.totalorder %s20, 3
      %p55 = por %p53, %p54
      %p57 = scmp.ne.s32.totalorder %s40, %s56
      %p58 = scmp.eq.s32.totalorder %s20, 0
      %p59 = por %p57, %p58
      %s60 = ssub.s32 %s22, %s29
      %p61 = scmp.eq.s32.totalorder %s60, 0
      %s63 = sadd.s32 %s62, 1
      %s64 = scalar_select %p61, %s62, %s63
      %p67 = pneg %p61
      %p68 = scmp.eq.s32.totalorder %s14, 3
      %p69 = por %p67, %p68
      %p70 = scmp.ne.s32.totalorder %s62, %s65
      %p71 = scmp.eq.s32.totalorder %s14, 0
      %p72 = por %p70, %p71
      %p73 = scmp.ne.s32.totalorder %s62, %s65
      %p74 = scmp.eq.s32.totalorder %s19, 3
      %p75 = por %p73, %p74
      %p76 = scmp.ne.s32.totalorder %s65, %s66
      %p77 = scmp.eq.s32.totalorder %s19, 0
      %p78 = por %p76, %p77
      %p79 = scmp.ne.s32.totalorder %s65, %s66
      %p80 = scmp.eq.s32.totalorder %s20, 3
      %p81 = por %p79, %p80
      %p83 = scmp.ne.s32.totalorder %s66, %s82
      %p84 = scmp.eq.s32.totalorder %s20, 0
      %p85 = por %p83, %p84
      %s86 = ssub.s32 %s21, %s33
      %s87 = ssub.s32 %s22, %s29
      %s88 = sor.u32 %s86, %s87
      %p89 = scmp.eq.s32.totalorder %s88, 0
      %s91 = sadd.s32 %s90, 1
      %s92 = scalar_select %p89, %s90, %s91
      %p95 = pneg %p89
      %p96 = scmp.eq.s32.totalorder %s14, 3
      %p97 = por %p95, %p96
      %p98 = scmp.ne.s32.totalorder %s90, %s93
      %p99 = scmp.eq.s32.totalorder %s14, 0
      %p100 = por %p98, %p99
      %p101 = scmp.ne.s32.totalorder %s90, %s93
      %p102 = scmp.eq.s32.totalorder %s19, 3
      %p103 = por %p101, %p102
      %p104 = scmp.ne.s32.totalorder %s93, %s94
      %p105 = scmp.eq.s32.totalorder %s19, 0
      %p106 = por %p104, %p105
      %p107 = scmp.ne.s32.totalorder %s93, %s94
      %p108 = scmp.eq.s32.totalorder %s20, 3
      %p109 = por %p107, %p108
      %p111 = scmp.ne.s32.totalorder %s94, %s110
      %p112 = scmp.eq.s32.totalorder %s20, 0
      %p113 = por %p111, %p112
      %p114 = scmp.le.s32.totalorder 1, %s14
      %p115 = scmp.lt.s32.totalorder %s14, 5
      %p116 = pnand %p114, %p115
      %p117 = pneg %p116
      // Predicated region
      $region9: #{tpu_custom_call.1} parent=5 // pred_check
        _
      $region10: #{tpu_custom_call.1} parent=5 // pred_check_branch
        %119 = sbr.rel (%p116) target = $region12
      $region11: #{tpu_custom_call.1} parent=5 // pred_region
        %s120 = ssub.s32 %s14, 1
        // Predicated region
        $region13: #{tpu_custom_call.1} parent=11 // pred_check
          %p121 = pneg %p78
        $region14: #{tpu_custom_call.1} parent=11 // pred_check_branch
          %123 = sbr.rel (%p121) target = $region16
        $region15: #{tpu_custom_call.1} parent=11 // pred_region
          %p124 = scmp.lt.s32.totalorder %s24, 0
          %s125 = scalar_select %p124, %s24, 0
          %s126 = smul.addr %s125, 2
          %s127 = scalar_lea.vmem %s1, %s126
        $region16: #{tpu_custom_call.1} parent=11 // pred_fallthru
          _
      $region12: #{tpu_custom_call.1} parent=5 // pred_fallthru
        _
      %p128 = scmp.lt.s32.totalorder %s14, 4
      // Predicated region
      $region17: #{tpu_custom_call.1} parent=5 // pred_check
        %p129 = pneg %p128
      $region18: #{tpu_custom_call.1} parent=5 // pred_check_branch
        %131 = sbr.rel (%p129) target = $region20
      $region19: #{tpu_custom_call.1} parent=5 // pred_region
        // Predicated region
        $region21: #{tpu_custom_call.1} parent=19 // pred_check
          %p132 = pneg %p46
        $region22: #{tpu_custom_call.1} parent=19 // pred_check_branch
          %134 = sbr.rel (%p132) target = $region24
        $region23: #{tpu_custom_call.1} parent=19 // pred_region
          %s135 = sand.u32 %s36, 1
          %s136 = scalar_lea.sflag [#allocation3], %s135
          %s137 = sand.u32 %s36, 1
          %s138 = scalar_lea.vmem [#allocation2], %s137
          %s140 = ssub.s32 16, 16
          %141 = vsyncadd %s136, %s140
          %s142 = smul.addr %s21, 16
          %s143 = scalar_lea.hbm %s0, %s142
          %s145 = sshll.u32 %s138, 4
          %s146 = int_to_ptr.vmem [resolvable:$true] %s145
          %148 = dma.hbm_to_vmem [thread:$0]  %s143, 16, %s146, %s136
        $region24: #{tpu_custom_call.1} parent=19 // pred_fallthru
          _
      $region20: #{tpu_custom_call.1} parent=5 // pred_fallthru
        _
      %p149 = scmp.le.s32.totalorder 1, %s14
      %p150 = scmp.lt.s32.totalorder %s14, 5
      %p151 = pnand %p149, %p150
      %p152 = pneg %p151
      // Predicated region
      $region25: #{tpu_custom_call.1} parent=5 // pred_check
        _
      $region26: #{tpu_custom_call.1} parent=5 // pred_check_branch
        %154 = sbr.rel (%p151) target = $region28
      $region27: #{tpu_custom_call.1} parent=5 // pred_region
        %s155 = ssub.s32 %s14, 1
        %s156 = sand.u32 %s39, 1
        %s157 = scalar_lea.sflag [#allocation3], %s156
        %s158 = sand.u32 %s39, 1
        %s159 = scalar_lea.vmem [#allocation2], %s158
        // Predicated region
        $region29: #{tpu_custom_call.1} parent=27 // pred_check
          %p160 = pneg %p52
        $region30: #{tpu_custom_call.1} parent=27 // pred_check_branch
          %162 = sbr.rel (%p160) target = $region32
        $region31: #{tpu_custom_call.1} parent=27 // pred_region
          %163 = dma.done %s157, 16
        $region32: #{tpu_custom_call.1} parent=27 // pred_fallthru
          _
        %s164 = sand.u32 %s39, 1
        %s165 = scalar_lea.sflag [#allocation3], %s164
        %s166 = sand.u32 %s39, 1
        %s167 = scalar_lea.vmem [#allocation2], %s166
        %p168 = pneg %p52
        %p169 = pneg %p49
        %p170 = scmp.lt.s32.totalorder %s24, 0
        %s171 = scalar_select %p170, %s24, 0
        %s172 = smul.addr %s171, 2
        %s173 = scalar_lea.vmem %s1, %s172
        %p174 = pneg %p78
        %p175 = pneg %p75
        %p176 = pneg %p106
        %p177 = pneg %p103
        %s178 = sand.u32 %s93, 1
        %s179 = scalar_lea.sflag [#allocation4], %s178
        %s180 = sand.u32 %s93, 1
        %s181 = smul.addr %s180, 8
        %s182 = scalar_lea.vmem [#allocation5], %s181
        %p183 = scmp.lt.s32.totalorder %s24, 0
        %s184 = scalar_select %p183, %s24, 0
        %s185 = smul.addr %s184, 2
        %s186 = scalar_lea.vmem %s1, %s185
        %v187 = vld [vmem:[%s159] sm:$0x1]
        %s188 = vtos %v187
        %190 = vrot.lane.b32.xlu0 %v187, 127
        %v191 = vpop.permute.xlu0 %190
        %s193 = vtos %v191
        %194 = vrot.lane.b32.xlu0 %v187, 126
        %v195 = vpop.permute.xlu0 %194
        %s197 = vtos %v195
        %198 = vrot.lane.b32.xlu0 %v187, 125
        %v199 = vpop.permute.xlu0 %198
        %s201 = vtos %v199
        %202 = vrot.lane.b32.xlu0 %v187, 124
        %v203 = vpop.permute.xlu0 %202
        %s205 = vtos %v203
        %206 = vrot.lane.b32.xlu0 %v187, 123
        %v207 = vpop.permute.xlu0 %206
        %s209 = vtos %v207
        %210 = vrot.lane.b32.xlu0 %v187, 122
        %v211 = vpop.permute.xlu0 %210
        %s213 = vtos %v211
        %214 = vrot.lane.b32.xlu0 %v187, 121
        %v215 = vpop.permute.xlu0 %214
        %s217 = vtos %v215
        %218 = vrot.lane.b32.xlu0 %v187, 120
        %v219 = vpop.permute.xlu0 %218
        %s221 = vtos %v219
        %222 = vrot.lane.b32.xlu0 %v187, 119
        %v223 = vpop.permute.xlu0 %222
        %s225 = vtos %v223
        %226 = vrot.lane.b32.xlu0 %v187, 118
        %v227 = vpop.permute.xlu0 %226
        %s229 = vtos %v227
        %230 = vrot.lane.b32.xlu0 %v187, 117
        %v231 = vpop.permute.xlu0 %230
        %s233 = vtos %v231
        %234 = vrot.lane.b32.xlu0 %v187, 116
        %v235 = vpop.permute.xlu0 %234
        %s237 = vtos %v235
        %238 = vrot.lane.b32.xlu0 %v187, 115
        %v239 = vpop.permute.xlu0 %238
        %s241 = vtos %v239
        %v242 = vld [vmem:[%s186] sm:$0x3]
        %s243 = smul.f32 %s188, 3.1415927
        %v244 = vstv %s243
        %v245 = vmul.f32 %v244, %v242
        %v246 = vlog2.pop %v245
        %v247 = vmul.f32 %v246, 0.6931472
        %v248 = vmul.f32 %v247, 0.33333334
        %v249 = vmul.f32 %v248, 1.442695
        %v250 = vpow.pop %v249
        %v251 = vmul.f32 %v250, %v250
        %v252 = vmul.f32 %v251, %v250
        %v253 = vmul.f32 %v251, %v251
        %v254 = vmul.f32 %v253, %v250
        %v255 = vmul.f32 %v252, %v252
        %v256 = vmul.f32 %v255, %v250
        %v257 = vstv %s225
        %v258 = vmul.f32 %v257, %v256
        %v259 = vstv %s221
        %v260 = vmul.f32 %v259, %v248
        %v261 = vstv %s217
        %v262 = vadd.f32 %v261, %v260
        %v263 = vmul.f32 %v262, %v255
        %v264 = vadd.f32 %v258, %v263
        %v265 = vstv %s213
        %v266 = vmul.f32 %v265, %v248
        %v267 = vstv %s209
        %v268 = vadd.f32 %v267, %v266
        %v269 = vmul.f32 %v268, %v254
        %v270 = vadd.f32 %v264, %v269
        %v271 = vstv %s205
        %v272 = vmul.f32 %v271, %v253
        %v273 = vadd.f32 %v270, %v272
        %v274 = vstv %s201
        %v275 = vmul.f32 %v274, %v252
        %v276 = vadd.f32 %v273, %v275
        %v277 = vstv %s197
        %v278 = vmul.f32 %v277, %v251
        %v279 = vadd.f32 %v276, %v278
        %v280 = vstv %s193
        %v281 = vadd.f32 %v279, %v280
        %v282 = vrcp.pop %v254
        %v283 = vmul.f32 %v281, %v282
        %v284 = vstv %s229
        %v285 = vsub.f32 %v283, %v284
        %v286 = vrsqrt.pop %v256
        %v287 = vstv %s233
        %v288 = vmul.f32 %v287, %v286
        %v289 = vand.u32 2147483647, %v285
        %vm290 = vcmp.le.f32.partialorder %v289, 0.7853982
        %vm291 = vcmp.lt.s32.totalorder %v285, 0
        %v292 = vand.u32 %v285, 2139095040
        %v293 = vshrl.u32 %v292, 23
        %v294 = vsub.s32 %v293, 127
        %v295 = vand.u32 2147483647, %v285
        %v296 = vand.u32 %v295, 8388607
        %v297 = vor.u32 %v296, 8388608
        %v298 = vsub.s32 0, %v297
        %v299 = vadd.s32 %v294, 1
        %vm300 = vcmp.gt.s32.totalorder %v299, 0
        %v301 = vsel %vm300, %v299, 0
        %v302 = vshrl.u32 %v301, 5
        %v303 = vand.u32 %v301, 31
        %v304 = vsub.s32 32, %v303
        %v305 = vshrl.u32 683565275, %v304
        %v306 = vshll.u32 683565275, %v303
        %v307 = vshrl.u32 2475754826, %v304
        %v308 = vor.u32 %v306, %v307
        %v309 = vshll.u32 2475754826, %v303
        %v310 = vshrl.u32 2131351028, %v304
        %v311 = vor.u32 %v309, %v310
        %v312 = vshll.u32 2131351028, %v303
        %v313 = vshrl.u32 2102212464, %v304
        %v314 = vor.u32 %v312, %v313
        %v315 = vshll.u32 2102212464, %v303
        %v316 = vshrl.u32 920167782, %v304
        %v317 = vor.u32 %v315, %v316
        %v318 = vshll.u32 920167782, %v303
        %v319 = vshrl.u32 1326507024, %v304
        %v320 = vor.u32 %v318, %v319
        %vm321 = vcmp.lt.s32.totalorder %v302, 1
        %vm322 = vcmp.lt.s32.totalorder %v302, 2
        %vm323 = vcmp.lt.s32.totalorder %v302, 3
        %vm324 = vcmp.lt.s32.totalorder %v302, 4
        %v325 = vsel %vm321, %v305, %v308
        %v326 = vsel %vm324, %v314, 2102212464
        %v327 = vsel %vm323, %v311, %v326
        %v328 = vsel %vm322, %v325, %v327
        %v329 = vsel %vm321, %v308, %v311
        %v330 = vsel %vm324, %v317, 920167782
        %v331 = vsel %vm323, %v314, %v330
        %v332 = vsel %vm322, %v329, %v331
        %v333 = vsel %vm321, %v311, %v314
        %v334 = vsel %vm324, %v320, 1326507024
        %v335 = vsel %vm323, %v317, %v334
        %v336 = vsel %vm322, %v333, %v335
        %v337 = vshll.u32 %v297, 8
        %v338 = vmul.u32.u64.compose %v337, %v336
        %v339 = vextract.low.u32 %v338
        %v340 = vextract.high.u32 %v338
        %v341 = vmul.u32.u64.compose %v337, %v332
        %v342 = vextract.low.u32 %v341
        %v343 = vextract.high.u32 %v341
        %v344 = vmul.u32 %v337, %v328
        %v345 = vadd.s32 %v340, %v342
        %vm346 = vc.u32 %v340, %v342
        %v347 = vadd.s32 %v343, 1
        %v348 = vsel %vm346, %v347, %v343
        %v349 = vadd.s32 %v344, %v348
        %v350 = vadd.s32 %v349, 536870912
        %v351 = vshrl.u32 %v350, 30
        %v352 = vshll.u32 %v351, 30
        %v353 = vsub.s32 %v349, %v352
        %vm354 = vcmp.lt.s32.totalorder %v353, 0
        %v355 = vsub.s32 0, %v353
        %v356 = vsel %vm354, %v355, %v353
        %v357 = vclz %v356
        %v358 = vsub.s32 %v357, 2
        %vm359 = vcmp.gt.s32.totalorder 0, %v358
        %v360 = vsel %vm359, 0, %v358
        %v361 = vsub.s32 32, %v360
        %v362 = vshll.u32 %v353, %v360
        %v363 = vshrl.u32 %v345, %v361
        %v364 = vor.u32 %v362, %v363
        %v365 = vsub.s32 4294967266, %v360
        %v366 = vadd.s32 %v365, 127
        %v367 = vshll.u32 %v366, 23
        %v368 = vor.u32 4788187, %v367
        %v369 = vand.u32 2147483647, %v368
        %v371 = vcvt.s32.f32 %v364
        %v372 = vmul.f32 %v371, %v369
        %v373 = vxor.u32 %v372, 2147483648
        %v374 = vsel %vm291, %v373, %v372
        %v375 = vsub.s32 4, %v351
        %v376 = vsel %vm291, %v375, %v351
        %v377 = vsel %vm290, %v285, %v374
        %v378 = vsel %vm290, 0, %v376
        %v379 = vcosq.f32.pop %v377
        %v380 = vsinq.f32.pop %v377
        %vm381 = vweird.f32 %v285
        %v382 = vand.u32 %v378, 3
        %vm383 = vcmp.lt.s32.totalorder %v382, 2
        %vm384 = vcmp.eq.s32.totalorder %v382, 0
        %v385 = vxor.u32 %v380, 2147483648
        %v386 = vsel %vm384, %v379, %v385
        %vm387 = vcmp.eq.s32.totalorder %v382, 2
        %v388 = vxor.u32 %v379, 2147483648
        %v389 = vsel %vm387, %v388, %v380
        %v390 = vsel %vm383, %v386, %v389
        %v391 = vsel %vm381, nan, %v390
        %v392 = vand.u32 2147483647, %v285
        %vm393 = vcmp.le.f32.partialorder %v392, 0.7853982
        %vm394 = vcmp.lt.s32.totalorder %v285, 0
        %v395 = vand.u32 %v285, 2139095040
        %v396 = vshrl.u32 %v395, 23
        %v397 = vsub.s32 %v396, 127
        %v398 = vand.u32 2147483647, %v285
        %v399 = vand.u32 %v398, 8388607
        %v400 = vor.u32 %v399, 8388608
        %v401 = vsub.s32 0, %v400
        %v402 = vadd.s32 %v397, 1
        %vm403 = vcmp.gt.s32.totalorder %v402, 0
        %v404 = vsel %vm403, %v402, 0
        %v405 = vshrl.u32 %v404, 5
        %v406 = vand.u32 %v404, 31
        %v407 = vsub.s32 32, %v406
        %v408 = vshrl.u32 683565275, %v407
        %v409 = vshll.u32 683565275, %v406
        %v410 = vshrl.u32 2475754826, %v407
        %v411 = vor.u32 %v409, %v410
        %v412 = vshll.u32 2475754826, %v406
        %v413 = vshrl.u32 2131351028, %v407
        %v414 = vor.u32 %v412, %v413
        %v415 = vshll.u32 2131351028, %v406
        %v416 = vshrl.u32 2102212464, %v407
        %v417 = vor.u32 %v415, %v416
        %v418 = vshll.u32 2102212464, %v406
        %v419 = vshrl.u32 920167782, %v407
        %v420 = vor.u32 %v418, %v419
        %v421 = vshll.u32 920167782, %v406
        %v422 = vshrl.u32 1326507024, %v407
        %v423 = vor.u32 %v421, %v422
        %vm424 = vcmp.lt.s32.totalorder %v405, 1
        %vm425 = vcmp.lt.s32.totalorder %v405, 2
        %vm426 = vcmp.lt.s32.totalorder %v405, 3
        %vm427 = vcmp.lt.s32.totalorder %v405, 4
        %v428 = vsel %vm424, %v408, %v411
        %v429 = vsel %vm427, %v417, 2102212464
        %v430 = vsel %vm426, %v414, %v429
        %v431 = vsel %vm425, %v428, %v430
        %v432 = vsel %vm424, %v411, %v414
        %v433 = vsel %vm427, %v420, 920167782
        %v434 = vsel %vm426, %v417, %v433
        %v435 = vsel %vm425, %v432, %v434
        %v436 = vsel %vm424, %v414, %v417
        %v437 = vsel %vm427, %v423, 1326507024
        %v438 = vsel %vm426, %v420, %v437
        %v439 = vsel %vm425, %v436, %v438
        %v440 = vshll.u32 %v400, 8
        %v441 = vmul.u32.u64.compose %v440, %v439
        %v442 = vextract.low.u32 %v441
        %v443 = vextract.high.u32 %v441
        %v444 = vmul.u32.u64.compose %v440, %v435
        %v445 = vextract.low.u32 %v444
        %v446 = vextract.high.u32 %v444
        %v447 = vmul.u32 %v440, %v431
        %v448 = vadd.s32 %v443, %v445
        %vm449 = vc.u32 %v443, %v445
        %v450 = vadd.s32 %v446, 1
        %v451 = vsel %vm449, %v450, %v446
        %v452 = vadd.s32 %v447, %v451
        %v453 = vadd.s32 %v452, 536870912
        %v454 = vshrl.u32 %v453, 30
        %v455 = vshll.u32 %v454, 30
        %v456 = vsub.s32 %v452, %v455
        %vm457 = vcmp.lt.s32.totalorder %v456, 0
        %v458 = vsub.s32 0, %v456
        %v459 = vsel %vm457, %v458, %v456
        %v460 = vclz %v459
        %v461 = vsub.s32 %v460, 2
        %vm462 = vcmp.gt.s32.totalorder 0, %v461
        %v463 = vsel %vm462, 0, %v461
        %v464 = vsub.s32 32, %v463
        %v465 = vshll.u32 %v456, %v463
        %v466 = vshrl.u32 %v448, %v464
        %v467 = vor.u32 %v465, %v466
        %v468 = vsub.s32 4294967266, %v463
        %v469 = vadd.s32 %v468, 127
        %v470 = vshll.u32 %v469, 23
        %v471 = vor.u32 4788187, %v470
        %v472 = vand.u32 2147483647, %v471
        %v474 = vcvt.s32.f32 %v467
        %v475 = vmul.f32 %v474, %v472
        %v476 = vxor.u32 %v475, 2147483648
        %v477 = vsel %vm394, %v476, %v475
        %v478 = vsub.s32 4, %v454
        %v479 = vsel %vm394, %v478, %v454
        %v480 = vsel %vm393, %v285, %v477
        %v481 = vsel %vm393, 0, %v479
        %v482 = vcosq.f32.pop %v480
        %v483 = vsinq.f32.pop %v480
        %vm484 = vweird.f32 %v285
        %v485 = vadd.s32 %v481, 3
        %v486 = vand.u32 %v485, 3
        %vm487 = vcmp.lt.s32.totalorder %v486, 2
        %vm488 = vcmp.eq.s32.totalorder %v486, 0
        %v489 = vxor.u32 %v483, 2147483648
        %v490 = vsel %vm488, %v482, %v489
        %vm491 = vcmp.eq.s32.totalorder %v486, 2
        %v492 = vxor.u32 %v482, 2147483648
        %v493 = vsel %vm491, %v492, %v483
        %v494 = vsel %vm487, %v490, %v493
        %v495 = vsel %vm484, nan, %v494
        %v496 = vmul.f32 %v288, %v391
        %v497 = vmul.f32 %v288, %v495
        %v498 = vsub.f32 0.0, %v497
        %v499 = vstv %s237
        %v500 = vmul.f32 %v499, %v498
        %501 = vst [vmem:[%s182] sm:$0x3] %v500
        %v502 = vmul.f32 %v499, %v496
        %v503 = vsub.f32 0.0, %v502
        %s504 = scalar_lea.vmem %s182, 2 [#allocation5]
        %505 = vst [vmem:[%s504] sm:$0x3] %v503
        %v506 = vstv %s241
        %v507 = vmul.f32 %v506, %v496
        %s508 = scalar_lea.vmem %s182, 4 [#allocation5]
        %509 = vst [vmem:[%s508] sm:$0x3] %v507
        %v510 = vmul.f32 %v506, %v498
        %s511 = scalar_lea.vmem %s182, 6 [#allocation5]
        %512 = vst [vmem:[%s511] sm:$0x3] %v510
        %s513 = sand.u32 %s93, 1
        %s514 = scalar_lea.sflag [#allocation4], %s513
        %s515 = sand.u32 %s93, 1
        %s516 = smul.addr %s515, 8
        %s517 = scalar_lea.vmem [#allocation5], %s516
        // Predicated region
        $region33: #{tpu_custom_call.1} parent=27 // pred_check
          %p518 = pneg %p103
        $region34: #{tpu_custom_call.1} parent=27 // pred_check_branch
          %520 = sbr.rel (%p518) target = $region36
        $region35: #{tpu_custom_call.1} parent=27 // pred_region
          %s522 = ssub.s32 128, 128
          %523 = vsyncadd %s514, %s522
          %s524 = sadd.s32 %s24, %s23
          %s525 = smul.addr %s524, 32
          %s526 = scalar_lea.hbm %s2, %s525
          %s527 = sshll.u32 %s517, 4
          %s528 = int_to_ptr.vmem [resolvable:$true] %s527
          %533 = dma.vmem_to_hbm [thread:$0]  %s528, 128, %s526, %s514, 32, 128, 2
        $region36: #{tpu_custom_call.1} parent=27 // pred_fallthru
          _
      $region28: #{tpu_custom_call.1} parent=5 // pred_fallthru
        _
      %p534 = scmp.le.s32.totalorder 2, %s14
      // Predicated region
      $region37: #{tpu_custom_call.1} parent=5 // pred_check
        %p535 = pneg %p534
      $region38: #{tpu_custom_call.1} parent=5 // pred_check_branch
        %537 = sbr.rel (%p535) target = $region40
      $region39: #{tpu_custom_call.1} parent=5 // pred_region
        %s538 = ssub.s32 %s14, 2
        // Predicated region
        $region41: #{tpu_custom_call.1} parent=39 // pred_check
          %p539 = pneg %p109
        $region42: #{tpu_custom_call.1} parent=39 // pred_check_branch
          %541 = sbr.rel (%p539) target = $region44
        $region43: #{tpu_custom_call.1} parent=39 // pred_region
          %s542 = sand.u32 %s94, 1
          %s543 = scalar_lea.sflag [#allocation4], %s542
          %s544 = sand.u32 %s94, 1
          %s545 = smul.addr %s544, 8
          %s546 = scalar_lea.vmem [#allocation5], %s545
          %547 = dma.done %s543, 128
        $region44: #{tpu_custom_call.1} parent=39 // pred_fallthru
          _
      $region40: #{tpu_custom_call.1} parent=5 // pred_fallthru
        _
    $region6: #{tpu_custom_call.1} parent=1 // loop_footer
      %s18 = sadd.s32 1, %s14
    $region7: #{tpu_custom_call.1} parent=1 // loop_footer_branch
      %13 = sbr.rel target = $region3
    $region8: #{tpu_custom_call.1} parent=1 // loop_exit
      _
    %548 = vsyncpa [#allocation3], 1
    %s549 = scalar_lea.sflag [#allocation3], 1
    %550 = vsyncpa %s549, 1
    %551 = vsyncpa [#allocation4], 1
    %s552 = scalar_lea.sflag [#allocation4], 1
    %553 = vsyncpa %s552, 1

</llo_original>
